<compile_context>
chip_gen: v5e
topology: v5e:2x2
jax: 0.10.0
libtpu: 0.0.40
codegen_flags: <defaults>
</compile_context>

<pallas_src>
import math

import jax
import jax.numpy as jnp
from jax.experimental import pallas as pl
from jax.experimental.pallas import tpu as pltpu


_LANE = 128      # vreg lane width
_SUBLANE = 8     # f32 sublane count


def _rup(x, m):
    return ((x + m - 1) // m) * m


def _make_fused_mlp_kernel(num_layers):
    """Build kernel(x_ref, w0, b0, w1, b1, ..., o_ref) computing the chained MLP."""

    def kernel(*refs):
        x_ref = refs[0]
        o_ref = refs[1 + 2 * num_layers]
        h = x_ref[...]
        for l in range(num_layers):
            w = refs[1 + 2 * l][...]            # (K_pad, N_pad), VMEM-resident
            b = refs[2 + 2 * l][...]            # (1, N_pad) row, broadcast over tm
            y = jnp.dot(h, w, preferred_element_type=jnp.float32) + b
            h = jnp.tanh(y)                     # f32 epilogue (safe on v5e too)
        o_ref[...] = h.astype(o_ref.dtype)

    return kernel


def encoder_forward(x, params, *, max_tm=256):
    """Fused Encoder forward: one pallas_call for all [Linear -> Tanh] blocks.

    x:       (M, K) float32
    params:  list of (w, b); w is (in_features, out_features) (transposed torch
             weight), b is (out_features,).
    """
    M, K = x.shape
    num_layers = len(params)
    feat = [K] + [w.shape[1] for (w, _) in params]
    feat_pad = [_rup(f, _LANE) for f in feat]          # lane-dense everywhere

    # Batch tiling: single grid step for small batches; 256-row tiles at scale
    # (grid axis is "parallel" so v7x shards it across its 2 TensorCores).
    if M <= max_tm:
        tm = _rup(M, _SUBLANE)
    else:
        tm = max_tm
    M_pad = _rup(M, tm)
    grid = (M_pad // tm,)

    # Zero-pad all operands; zeros propagate exactly through matmul + tanh so the
    # padded lanes never affect real outputs.
    x_pad = jnp.zeros((M_pad, feat_pad[0]), x.dtype).at[:M, :K].set(x)

    padded_inputs = [x_pad]
    in_specs = [pl.BlockSpec((tm, feat_pad[0]), lambda i: (i, 0))]
    for l, (w, b) in enumerate(params):
        kp, np_ = feat_pad[l], feat_pad[l + 1]
        w_pad = jnp.zeros((kp, np_), w.dtype).at[:w.shape[0], :w.shape[1]].set(w)
        b_pad = jnp.zeros((1, np_), b.dtype).at[0, :b.shape[0]].set(b)
        padded_inputs += [w_pad, b_pad]
        in_specs += [
            pl.BlockSpec((kp, np_), lambda i: (0, 0)),   # full weight, VMEM-resident
            pl.BlockSpec((1, np_), lambda i: (0, 0)),    # bias row
        ]
    n_out_pad = feat_pad[-1]

    flops = sum(2 * M * feat[l] * feat[l + 1] for l in range(num_layers))
    transc = sum(M * feat[l + 1] for l in range(num_layers))
    bytes_accessed = 4 * (M * K
                          + sum(w.size + b.size for (w, b) in params)
                          + M * feat[-1])

    out_pad = pl.pallas_call(
        _make_fused_mlp_kernel(num_layers),
        out_shape=jax.ShapeDtypeStruct((M_pad, n_out_pad), x.dtype),
        grid_spec=pltpu.PrefetchScalarGridSpec(
            num_scalar_prefetch=0,
            grid=grid,
            in_specs=in_specs,
            out_specs=pl.BlockSpec((tm, n_out_pad), lambda i: (i, 0)),
        ),
        compiler_params=pltpu.CompilerParams(
            dimension_semantics=("parallel",)),
        cost_estimate=pl.CostEstimate(
            flops=flops, transcendentals=transc, bytes_accessed=bytes_accessed),
        # TODO(synk): for hidden sizes in the thousands, switch the weight specs to
        # K-tiling + f32 accumulator scratch and set vmem_limit_bytes (v7x: 64 MiB).
    )(*padded_inputs)

    return out_pad[:M, :feat[-1]]


encoder_forward_jit = jax.jit(encoder_forward)


def xavier_uniform(key, fan_in, fan_out, dtype=jnp.float32):
    # Matches nn.init.xavier_uniform_ (gain=1.0).
    limit = math.sqrt(6.0 / (fan_in + fan_out))
    return jax.random.uniform(key, (fan_in, fan_out), dtype,
                              minval=-limit, maxval=limit)


def init_encoder_params(key, input_size, hidden_size):
    """Deterministic params for Encoder(input_size, hidden_size)."""
    sizes = [input_size] + list(hidden_size)
    params = []
    for i in range(len(hidden_size)):
        key, sub = jax.random.split(key)
        w = xavier_uniform(sub, sizes[i], sizes[i + 1])   # stored as (in, out)
        b = jnp.zeros((sizes[i + 1],), jnp.float32)       # torch: bias zeroed
        params.append((w, b))
    return params


def encoder_forward_ref(x, params):
    # Pure-JAX reference for correctness checking.
    for w, b in params:
        x = jnp.tanh(x @ w + b[None, :])
    return x


if __name__ == "__main__":
    key = jax.random.PRNGKey(0)
    batch = 16
    input_size = 32
    hidden_size = [64, 32, 16]

    k_param, k_x = jax.random.split(key)
    params = init_encoder_params(k_param, input_size, hidden_size)
    x = jax.random.normal(k_x, (batch, input_size), jnp.float32)

    out = encoder_forward_jit(x, params)
    out = jax.block_until_ready(out)

    ref = encoder_forward_ref(x, params)
    assert out.shape == (batch, hidden_size[-1]), out.shape
    assert jnp.allclose(out, ref, atol=1e-5, rtol=1e-5), "mismatch vs reference"

    # Also exercise a batch not divisible by 8 (previously rejected by assert).
    x2 = jax.random.normal(jax.random.PRNGKey(2), (13, input_size), jnp.float32)
    out2 = jax.block_until_ready(encoder_forward_jit(x2, params))
    assert out2.shape == (13, hidden_size[-1])
    assert jnp.allclose(out2, encoder_forward_ref(x2, params), atol=1e-5, rtol=1e-5)

    print("KERNEL_OK")
</pallas_src>

<mosaic_0001>
module attributes {stable_mosaic.version = 11 : i64} {
  func.func @kernel(%arg0: i32, %arg1: memref<16x128xf32, #tpu.memory_space<vmem>>, %arg2: memref<128x128xf32, #tpu.memory_space<vmem>>, %arg3: memref<1x128xf32, #tpu.memory_space<vmem>>, %arg4: memref<128x128xf32, #tpu.memory_space<vmem>>, %arg5: memref<1x128xf32, #tpu.memory_space<vmem>>, %arg6: memref<128x128xf32, #tpu.memory_space<vmem>>, %arg7: memref<1x128xf32, #tpu.memory_space<vmem>>, %arg8: memref<16x128xf32, #tpu.memory_space<vmem>>) attributes {dimension_semantics = [#tpu.dimension_semantics<parallel>], iteration_bounds = array<i64: 1>, scalar_prefetch = 0 : i64, scratch_operands = 0 : i64, tpu.core_type = #tpu.core_type<tc>, window_params = [{transform_indices = @transform_0, window_bounds = array<i64: 16, 128>}, {pipeline_mode = #tpu.pipeline_mode<synchronous>, transform_indices = @transform_1, window_bounds = array<i64: 128, 128>}, {pipeline_mode = #tpu.pipeline_mode<synchronous>, transform_indices = @transform_2, window_bounds = array<i64: 1, 128>}, {pipeline_mode = #tpu.pipeline_mode<synchronous>, transform_indices = @transform_3, window_bounds = array<i64: 128, 128>}, {pipeline_mode = #tpu.pipeline_mode<synchronous>, transform_indices = @transform_4, window_bounds = array<i64: 1, 128>}, {pipeline_mode = #tpu.pipeline_mode<synchronous>, transform_indices = @transform_5, window_bounds = array<i64: 128, 128>}, {pipeline_mode = #tpu.pipeline_mode<synchronous>, transform_indices = @transform_6, window_bounds = array<i64: 1, 128>}, {transform_indices = @transform_7, window_bounds = array<i64: 16, 128>}]} {
    %c0 = arith.constant 0 : index
    %c0_0 = arith.constant 0 : index
    %0 = vector.load %arg1[%c0, %c0_0] : memref<16x128xf32, #tpu.memory_space<vmem>>, vector<16x128xf32>
    %c0_1 = arith.constant 0 : index
    %c0_2 = arith.constant 0 : index
    %1 = vector.load %arg2[%c0_1, %c0_2] : memref<128x128xf32, #tpu.memory_space<vmem>>, vector<128x128xf32>
    %c0_3 = arith.constant 0 : index
    %c0_4 = arith.constant 0 : index
    %2 = vector.load %arg3[%c0_3, %c0_4] : memref<1x128xf32, #tpu.memory_space<vmem>>, vector<1x128xf32>
    %cst = arith.constant dense<0.000000e+00> : vector<16x128xf32>
    %3 = tpu.matmul %0, %1, %cst {dimension_numbers = #tpu.dot_dimension_numbers<[1], [0], [0], [1], [0, 0, 1, 1], [], []>} : vector<16x128xf32>, vector<128x128xf32>, vector<16x128xf32> -> vector<16x128xf32>
    %4 = vector.broadcast %2 : vector<1x128xf32> to vector<16x128xf32>
    %5 = arith.addf %3, %4 : vector<16x128xf32>
    %6 = math.tanh %5 : vector<16x128xf32>
    %c0_5 = arith.constant 0 : index
    %c0_6 = arith.constant 0 : index
    %7 = vector.load %arg4[%c0_5, %c0_6] : memref<128x128xf32, #tpu.memory_space<vmem>>, vector<128x128xf32>
    %c0_7 = arith.constant 0 : index
    %c0_8 = arith.constant 0 : index
    %8 = vector.load %arg5[%c0_7, %c0_8] : memref<1x128xf32, #tpu.memory_space<vmem>>, vector<1x128xf32>
    %cst_9 = arith.constant dense<0.000000e+00> : vector<16x128xf32>
    %9 = tpu.matmul %6, %7, %cst_9 {dimension_numbers = #tpu.dot_dimension_numbers<[1], [0], [0], [1], [0, 0, 1, 1], [], []>} : vector<16x128xf32>, vector<128x128xf32>, vector<16x128xf32> -> vector<16x128xf32>
    %10 = vector.broadcast %8 : vector<1x128xf32> to vector<16x128xf32>
    %11 = arith.addf %9, %10 : vector<16x128xf32>
    %12 = math.tanh %11 : vector<16x128xf32>
    %c0_10 = arith.constant 0 : index
    %c0_11 = arith.constant 0 : index
    %13 = vector.load %arg6[%c0_10, %c0_11] : memref<128x128xf32, #tpu.memory_space<vmem>>, vector<128x128xf32>
    %c0_12 = arith.constant 0 : index
    %c0_13 = arith.constant 0 : index
    %14 = vector.load %arg7[%c0_12, %c0_13] : memref<1x128xf32, #tpu.memory_space<vmem>>, vector<1x128xf32>
    %cst_14 = arith.constant dense<0.000000e+00> : vector<16x128xf32>
    %15 = tpu.matmul %12, %13, %cst_14 {dimension_numbers = #tpu.dot_dimension_numbers<[1], [0], [0], [1], [0, 0, 1, 1], [], []>} : vector<16x128xf32>, vector<128x128xf32>, vector<16x128xf32> -> vector<16x128xf32>
    %16 = vector.broadcast %14 : vector<1x128xf32> to vector<16x128xf32>
    %17 = arith.addf %15, %16 : vector<16x128xf32>
    %18 = math.tanh %17 : vector<16x128xf32>
    %c0_15 = arith.constant 0 : index
    %c0_16 = arith.constant 0 : index
    %19 = vector.load %arg8[%c0_15, %c0_16] : memref<16x128xf32, #tpu.memory_space<vmem>>, vector<16x128xf32>
    tpu.vector_store %arg8[%c0_15, %c0_16], %18 {strides = array<i32>} : memref<16x128xf32, #tpu.memory_space<vmem>>, vector<16x128xf32>,
    return
  }
  func.func @transform_0(%arg0: i32) -> (i32, i32) {
    %c0_i32 = arith.constant 0 : i32
    %c0_i32_0 = arith.constant 0 : i32
    return %arg0, %c0_i32 : i32, i32
  }
  func.func @transform_1(%arg0: i32) -> (i32, i32) {
    %c0_i32 = arith.constant 0 : i32
    %c0_i32_0 = arith.constant 0 : i32
    %c0_i32_1 = arith.constant 0 : i32
    return %c0_i32, %c0_i32_0 : i32, i32
  }
  func.func @transform_2(%arg0: i32) -> (i32, i32) {
    %c0_i32 = arith.constant 0 : i32
    %c0_i32_0 = arith.constant 0 : i32
    %c0_i32_1 = arith.constant 0 : i32
    return %c0_i32, %c0_i32_0 : i32, i32
  }
  func.func @transform_3(%arg0: i32) -> (i32, i32) {
    %c0_i32 = arith.constant 0 : i32
    %c0_i32_0 = arith.constant 0 : i32
    %c0_i32_1 = arith.constant 0 : i32
    return %c0_i32, %c0_i32_0 : i32, i32
  }
  func.func @transform_4(%arg0: i32) -> (i32, i32) {
    %c0_i32 = arith.constant 0 : i32
    %c0_i32_0 = arith.constant 0 : i32
    %c0_i32_1 = arith.constant 0 : i32
    return %c0_i32, %c0_i32_0 : i32, i32
  }
  func.func @transform_5(%arg0: i32) -> (i32, i32) {
    %c0_i32 = arith.constant 0 : i32
    %c0_i32_0 = arith.constant 0 : i32
    %c0_i32_1 = arith.constant 0 : i32
    return %c0_i32, %c0_i32_0 : i32, i32
  }
  func.func @transform_6(%arg0: i32) -> (i32, i32) {
    %c0_i32 = arith.constant 0 : i32
    %c0_i32_0 = arith.constant 0 : i32
    %c0_i32_1 = arith.constant 0 : i32
    return %c0_i32, %c0_i32_0 : i32, i32
  }
  func.func @transform_7(%arg0: i32) -> (i32, i32) {
    %c0_i32 = arith.constant 0 : i32
    %c0_i32_0 = arith.constant 0 : i32
    return %arg0, %c0_i32 : i32, i32
  }
}

</mosaic_0001>

<llo_original>
// kernel: encoder_forward.1
$region0: #{encoder_forward.1}
  #allocation0 [shape = 'u32[]', space=smem, size = 0x4, offset = 0x4, fixed_abs, tag = 'smem constant byte address 0x4 - core index']
  #allocation1 [shape = 'u32[72,128]{1,0:T(1,128)}', space=vmem, size = 0x9000, scoped, tag = 'internal scratch']
  %s0 = inlined_call_operand.vmem [shape: f32[16,128], index: 0, kind: input, shape index: {}]
  %s1 = inlined_call_operand.vmem [shape: f32[128,128], index: 1, kind: input, shape index: {}]
  %s2 = inlined_call_operand.vmem [shape: f32[1,128], index: 2, kind: input, shape index: {}]
  %s3 = inlined_call_operand.vmem [shape: f32[128,128], index: 3, kind: input, shape index: {}]
  %s4 = inlined_call_operand.vmem [shape: f32[1,128], index: 4, kind: input, shape index: {}]
  %s5 = inlined_call_operand.vmem [shape: f32[128,128], index: 5, kind: input, shape index: {}]
  %s6 = inlined_call_operand.vmem [shape: f32[1,128], index: 6, kind: input, shape index: {}]
  %s7 = inlined_call_operand.hbm [shape: f32[16,128], index: 7, kind: output, shape index: {}]
  %s8 = sld [smem:[#allocation0]]
  $region38: #{encoder_forward.1} parent=0
    _
  %s10 = ssub.s32 1, %s8
  %s11 = scalar_select 0, %s10, %s8
  $region1: #{encoder_forward.1} parent=0
    #allocation2 [shape = 'u8[8192]{0}', space=vmem, size = 0x2000, scoped, tag = 'output window, operand 0, single buffered']
    #allocation3 [shape = 's32[1]{0}', space=sflag, size = 0x4, scoped, tag = 'scoped memory for encoder_forward.1']
    %12 = vsyncpa [#allocation3], 0
    // Predicated region
    $region2: #{encoder_forward.1} parent=1 // pred_check
      _
    $region3: #{encoder_forward.1} parent=1 // pred_check_branch
      %14 = sbr.rel (0) target = $region5
    $region4: #{encoder_forward.1} parent=1 // pred_region
      _
    $region5: #{encoder_forward.1} parent=1 // pred_fallthru
      _
    // Predicated region
    $region6: #{encoder_forward.1} parent=1 // pred_check
      _
    $region7: #{encoder_forward.1} parent=1 // pred_check_branch
      %16 = sbr.rel (0) target = $region9
    $region8: #{encoder_forward.1} parent=1 // pred_region
      _
    $region9: #{encoder_forward.1} parent=1 // pred_fallthru
      _
    // Predicated region
    $region10: #{encoder_forward.1} parent=1 // pred_check
      _
    $region11: #{encoder_forward.1} parent=1 // pred_check_branch
      %18 = sbr.rel (0) target = $region13
    $region12: #{encoder_forward.1} parent=1 // pred_region
      _
    $region13: #{encoder_forward.1} parent=1 // pred_fallthru
      _
    // Predicated region
    $region14: #{encoder_forward.1} parent=1 // pred_check
      _
    $region15: #{encoder_forward.1} parent=1 // pred_check_branch
      %20 = sbr.rel (0) target = $region17
    $region16: #{encoder_forward.1} parent=1 // pred_region
      _
    $region17: #{encoder_forward.1} parent=1 // pred_fallthru
      _
    // Predicated region
    $region18: #{encoder_forward.1} parent=1 // pred_check
      _
    $region19: #{encoder_forward.1} parent=1 // pred_check_branch
      %22 = sbr.rel (0) target = $region21
    $region20: #{encoder_forward.1} parent=1 // pred_region
      _
    $region21: #{encoder_forward.1} parent=1 // pred_fallthru
      _
    // Predicated region
    $region22: #{encoder_forward.1} parent=1 // pred_check
      _
    $region23: #{encoder_forward.1} parent=1 // pred_check_branch
      %24 = sbr.rel (0) target = $region25
    $region24: #{encoder_forward.1} parent=1 // pred_region
      _
    $region25: #{encoder_forward.1} parent=1 // pred_fallthru
      _
    // Predicated region
    $region26: #{encoder_forward.1} parent=1 // pred_check
      _
    $region27: #{encoder_forward.1} parent=1 // pred_check_branch
      %26 = sbr.rel (0) target = $region29
    $region28: #{encoder_forward.1} parent=1 // pred_region
      _
    $region29: #{encoder_forward.1} parent=1 // pred_fallthru
      _
    %v27 = vld [vmem:[%s0] sm:$0xff]
    %v28 = vld [vmem:[%s0 + $0x8] sm:$0xff]
    %v29 = vld [vmem:[%s1] sm:$0xff]
    %v30 = vld [vmem:[%s1 + $0x8] sm:$0xff]
    %v31 = vld [vmem:[%s1 + $0x10] sm:$0xff]
    %v32 = vld [vmem:[%s1 + $0x18] sm:$0xff]
    %v33 = vld [vmem:[%s1 + $0x20] sm:$0xff]
    %v34 = vld [vmem:[%s1 + $0x28] sm:$0xff]
    %v35 = vld [vmem:[%s1 + $0x30] sm:$0xff]
    %v36 = vld [vmem:[%s1 + $0x38] sm:$0xff]
    %v37 = vld [vmem:[%s1 + $0x40] sm:$0xff]
    %v38 = vld [vmem:[%s1 + $0x48] sm:$0xff]
    %v39 = vld [vmem:[%s1 + $0x50] sm:$0xff]
    %v40 = vld [vmem:[%s1 + $0x58] sm:$0xff]
    %v41 = vld [vmem:[%s1 + $0x60] sm:$0xff]
    %v42 = vld [vmem:[%s1 + $0x68] sm:$0xff]
    %v43 = vld [vmem:[%s1 + $0x70] sm:$0xff]
    %v44 = vld [vmem:[%s1 + $0x78] sm:$0xff]
    %v45 = vld [vmem:[%s2] sm:$0x1]
    %v47 = vperm.slane %v45, 0
    %49 = vmatpush.msra.mxu0 %v44
    %50 = vmatpush.msra.mxu0 %v43
    %51 = vmatpush.msra.mxu0 %v42
    %52 = vmatpush.msra.mxu0 %v41
    %53 = vmatpush.msra.mxu0 %v40
    %54 = vmatpush.msra.mxu0 %v39
    %55 = vmatpush.msra.mxu0 %v38
    %56 = vmatpush.msra.mxu0 %v37
    %57 = vmatpush.msra.mxu0 %v36
    %58 = vmatpush.msra.mxu0 %v35
    %59 = vmatpush.msra.mxu0 %v34
    %60 = vmatpush.msra.mxu0 %v33
    %61 = vmatpush.msra.mxu0 %v32
    %62 = vmatpush.msra.mxu0 %v31
    %63 = vmatpush.msra.mxu0 %v30
    %64 = vmatpush.msra.mxu0 %v29
    %65 = vmatmul.f32.gmra.mxu0 %v27
    %v66 = vpop.f32.mrf.mxu0
    %v67 = vadd.f32 %v47, %v66
    %68 = vmatmul.f32.gmra.mxu0 %v28
    %v69 = vpop.f32.mrf.mxu0
    %v70 = vadd.f32 %v47, %v69
    %71 = vdwg.mxu0
    %v72 = vtanh.pop %v67
    %v73 = vtanh.pop %v70
    %v74 = vld [vmem:[%s3] sm:$0xff]
    %v75 = vld [vmem:[%s3 + $0x8] sm:$0xff]
    %v76 = vld [vmem:[%s3 + $0x10] sm:$0xff]
    %v77 = vld [vmem:[%s3 + $0x18] sm:$0xff]
    %v78 = vld [vmem:[%s3 + $0x20] sm:$0xff]
    %v79 = vld [vmem:[%s3 + $0x28] sm:$0xff]
    %v80 = vld [vmem:[%s3 + $0x30] sm:$0xff]
    %v81 = vld [vmem:[%s3 + $0x38] sm:$0xff]
    %v82 = vld [vmem:[%s3 + $0x40] sm:$0xff]
    %v83 = vld [vmem:[%s3 + $0x48] sm:$0xff]
    %v84 = vld [vmem:[%s3 + $0x50] sm:$0xff]
    %v85 = vld [vmem:[%s3 + $0x58] sm:$0xff]
    %v86 = vld [vmem:[%s3 + $0x60] sm:$0xff]
    %v87 = vld [vmem:[%s3 + $0x68] sm:$0xff]
    %v88 = vld [vmem:[%s3 + $0x70] sm:$0xff]
    %v89 = vld [vmem:[%s3 + $0x78] sm:$0xff]
    %v90 = vld [vmem:[%s4] sm:$0x1]
    %v92 = vperm.slane %v90, 0
    %94 = vmatpush.msra.mxu0 %v89
    %95 = vmatpush.msra.mxu0 %v88
    %96 = vmatpush.msra.mxu0 %v87
    %97 = vmatpush.msra.mxu0 %v86
    %98 = vmatpush.msra.mxu0 %v85
    %99 = vmatpush.msra.mxu0 %v84
    %100 = vmatpush.msra.mxu0 %v83
    %101 = vmatpush.msra.mxu0 %v82
    %102 = vmatpush.msra.mxu0 %v81
    %103 = vmatpush.msra.mxu0 %v80
    %104 = vmatpush.msra.mxu0 %v79
    %105 = vmatpush.msra.mxu0 %v78
    %106 = vmatpush.msra.mxu0 %v77
    %107 = vmatpush.msra.mxu0 %v76
    %108 = vmatpush.msra.mxu0 %v75
    %109 = vmatpush.msra.mxu0 %v74
    %110 = vmatmul.f32.gmra.mxu0 %v72
    %v111 = vpop.f32.mrf.mxu0
    %v112 = vadd.f32 %v92, %v111
    %113 = vmatmul.f32.gmra.mxu0 %v73
    %v114 = vpop.f32.mrf.mxu0
    %v115 = vadd.f32 %v92, %v114
    %116 = vdwg.mxu0
    %v117 = vtanh.pop %v112
    %v118 = vtanh.pop %v115
    %v119 = vld [vmem:[%s5] sm:$0xff]
    %v120 = vld [vmem:[%s5 + $0x8] sm:$0xff]
    %v121 = vld [vmem:[%s5 + $0x10] sm:$0xff]
    %v122 = vld [vmem:[%s5 + $0x18] sm:$0xff]
    %v123 = vld [vmem:[%s5 + $0x20] sm:$0xff]
    %v124 = vld [vmem:[%s5 + $0x28] sm:$0xff]
    %v125 = vld [vmem:[%s5 + $0x30] sm:$0xff]
    %v126 = vld [vmem:[%s5 + $0x38] sm:$0xff]
    %v127 = vld [vmem:[%s5 + $0x40] sm:$0xff]
    %v128 = vld [vmem:[%s5 + $0x48] sm:$0xff]
    %v129 = vld [vmem:[%s5 + $0x50] sm:$0xff]
    %v130 = vld [vmem:[%s5 + $0x58] sm:$0xff]
    %v131 = vld [vmem:[%s5 + $0x60] sm:$0xff]
    %v132 = vld [vmem:[%s5 + $0x68] sm:$0xff]
    %v133 = vld [vmem:[%s5 + $0x70] sm:$0xff]
    %v134 = vld [vmem:[%s5 + $0x78] sm:$0xff]
    %v135 = vld [vmem:[%s6] sm:$0x1]
    %v137 = vperm.slane %v135, 0
    %139 = vmatpush.msra.mxu0 %v134
    %140 = vmatpush.msra.mxu0 %v133
    %141 = vmatpush.msra.mxu0 %v132
    %142 = vmatpush.msra.mxu0 %v131
    %143 = vmatpush.msra.mxu0 %v130
    %144 = vmatpush.msra.mxu0 %v129
    %145 = vmatpush.msra.mxu0 %v128
    %146 = vmatpush.msra.mxu0 %v127
    %147 = vmatpush.msra.mxu0 %v126
    %148 = vmatpush.msra.mxu0 %v125
    %149 = vmatpush.msra.mxu0 %v124
    %150 = vmatpush.msra.mxu0 %v123
    %151 = vmatpush.msra.mxu0 %v122
    %152 = vmatpush.msra.mxu0 %v121
    %153 = vmatpush.msra.mxu0 %v120
    %154 = vmatpush.msra.mxu0 %v119
    %155 = vmatmul.f32.gmra.mxu0 %v117
    %v156 = vpop.f32.mrf.mxu0
    %v157 = vadd.f32 %v137, %v156
    %158 = vmatmul.f32.gmra.mxu0 %v118
    %v159 = vpop.f32.mrf.mxu0
    %v160 = vadd.f32 %v137, %v159
    %161 = vdwg.mxu0
    %v162 = vtanh.pop %v157
    %v163 = vtanh.pop %v160
    %164 = vst [vmem:[#allocation2] sm:$0xff] %v162
    %165 = vst [vmem:[#allocation2 + $0x8] sm:$0xff] %v163
    // Predicated region
    $region30: #{encoder_forward.1} parent=1 // pred_check
      _
    $region31: #{encoder_forward.1} parent=1 // pred_check_branch
      %167 = sbr.rel (0) target = $region33
    $region32: #{encoder_forward.1} parent=1 // pred_region
      %169 = vsyncadd [#allocation3], 0
      %s170 = sshll.u32 [#allocation2], 4
      %s171 = int_to_ptr.vmem [resolvable:$true] %s170
      %s172 = sshll.u32 %s7, 4
      %s173 = int_to_ptr.hbm [resolvable:$true] %s172
      %178 = dma.vmem_to_hbm [thread:$0]  %s171, 256, %s173, [#allocation3], 128, 128, 8
    $region33: #{encoder_forward.1} parent=1 // pred_fallthru
      _
    // Predicated region
    $region34: #{encoder_forward.1} parent=1 // pred_check
      _
    $region35: #{encoder_forward.1} parent=1 // pred_check_branch
      %180 = sbr.rel (0) target = $region37
    $region36: #{encoder_forward.1} parent=1 // pred_region
      %182 = dma.done [#allocation3], 256
    $region37: #{encoder_forward.1} parent=1 // pred_fallthru
      _
    %183 = vsyncpa [#allocation3], 1

</llo_original>
